<compile_context>
chip_gen: v7x
topology: tpu7x:2x2x1
jax: 0.10.0
libtpu: 0.0.40
codegen_flags: <defaults>
</compile_context>

<pallas_src>
import numpy as np
import jax
import jax.numpy as jnp
from jax.experimental import pallas as pl
from jax.experimental.pallas import tpu as pltpu


def emb_sz_rule(n_cat):
    """Rule of thumb to pick embedding size corresponding to `n_cat` (fastai)."""
    return min(600, round(1.6 * n_cat ** 0.56))


def _round_up(x, m):
    return ((x + m - 1) // m) * m


# ------------------------- Pallas kernel -------------------------

def _make_multi_embed_kernel(n_cats, dims, n_cont, compute_dtype):
    """Kernel over one (batch, L-tile) block (batch squeezed away by the BlockSpec).

    Refs (in order):
      idx_ref  : (K, T)        raw categorical values, tokens on the lane axis
      cont_ref : (n_cont, T)   continuous channels (present only if n_cont > 0)
      w_refs   : K per-channel transposed tables, table i is (d_i, n_i), compute_dtype
      out_ref  : (sum(d_i) + n_cont, T) f32
    """
    n_cats = tuple(int(n) for n in n_cats)
    dims = tuple(int(d) for d in dims)
    K = len(n_cats)

    def kernel(*refs):
        idx_ref = refs[0]
        pos = 1
        cont_ref = None
        if n_cont > 0:
            cont_ref = refs[pos]
            pos += 1
        w_refs = refs[pos:pos + K]
        out_ref = refs[pos + K]

        t = idx_ref.shape[-1]

        d_off = 0
        for i in range(K):
            n_i, d_i = n_cats[i], dims[i]
            # Per-channel index row; round-half-to-even matches torch.round.  Indices
            # are clamped (jnp.take clip semantics; torch.nn.Embedding would raise).
            raw = idx_ref[pl.ds(i, 1), :]                                   # (1, T)
            ch = jnp.clip(jnp.round(raw.astype(jnp.float32)).astype(jnp.int32),
                          0, n_i - 1)                                       # (1, T)
            # Per-channel one-hot (n_i, T): exact 0/1 even in bf16.
            row = jax.lax.broadcasted_iota(jnp.int32, (n_i, t), 0)
            onehot = (row == ch).astype(compute_dtype)
            # (d_i, n_i) @ (n_i, T) -> (d_i, T): tokens stay on the lane axis,
            # accumulation in f32; exact gather equivalent.
            emb = jnp.dot(w_refs[i][...], onehot,
                          preferred_element_type=jnp.float32)
            out_ref[pl.ds(d_off, d_i), :] = emb
            d_off += d_i

        if n_cont > 0:
            out_ref[pl.ds(d_off, n_cont), :] = cont_ref[...].astype(jnp.float32)

    return kernel


# ------------------------- tiling / VMEM helpers -------------------------

def _choose_l_tiling(L, batch, max_tile_l=512):
    """Pick a lane tile (multiple of 128 that divides the padded L) and padded L."""
    l_pad = _round_up(L, 128)                 # lane-dense: unmasked 128-wide stores
    cands = [t for t in range(128, min(max_tile_l, l_pad) + 1, 128) if l_pad % t == 0]
    tile = max(cands)
    # v7x has two TensorCores: prefer >= 2 grid points when we can get them cheaply.
    if batch * (l_pad // tile) < 2:
        smaller = [t for t in cands if batch * (l_pad // t) >= 2]
        if smaller:
            tile = max(smaller)
    return tile, l_pad


def _vmem_limit_bytes(K, n_cont, d_out, tile_l, n_cats, table_bytes, compute_itemsize):
    est = 0
    est += 2 * K * tile_l * 4                                 # index tiles (2 buffers)
    est += 2 * n_cont * tile_l * 4                            # continuous tiles
    est += 2 * d_out * tile_l * 4                             # output tiles
    est += 2 * table_bytes                                    # tables (DMA'd once)
    est += sum(_round_up(n, 8) * tile_l * compute_itemsize for n in n_cats)  # one-hots
    est += _round_up(d_out, 8) * tile_l * 4                   # matmul results
    # generous headroom, clamped to what is safe on every chip (v7x VMEM = 64 MiB)
    return int(min(64 << 20, max(32 << 20, 2 * est + (4 << 20))))


# ------------------------- fused forward -------------------------

def multi_embedding_forward(x_cat, x_cont, tables, n_cats, dims, *, max_tile_l=512):
    """Fused forward.

    x_cat : (B, K, L) float  categorical channels (near-integer values)
    x_cont: (B, n_cont, L) float or None
    tables: list of K transposed embedding tables, table i of shape (d_i, n_i)
    returns (B, sum(d_i) + n_cont, L) float32
    """
    B, K, L = x_cat.shape
    assert K == len(n_cats) == len(dims) == len(tables)
    n_cont = 0 if x_cont is None else int(x_cont.shape[1])
    d_total = int(sum(dims))
    d_out = d_total + n_cont
    compute_dtype = tables[0].dtype

    tile_l, l_pad = _choose_l_tiling(L, B, max_tile_l)
    if l_pad != L:
        # Pad the token axis up to a multiple of 128 (padded tokens read row 0 of each
        # table and are sliced off afterwards) so every store is a full-lane store.
        x_cat = jnp.pad(x_cat, ((0, 0), (0, 0), (0, l_pad - L)))
        if n_cont:
            x_cont = jnp.pad(x_cont, ((0, 0), (0, 0), (0, l_pad - L)))

    grid = (B, l_pad // tile_l)
    kernel = _make_multi_embed_kernel(n_cats, dims, n_cont, compute_dtype)

    in_specs = [pl.BlockSpec((None, K, tile_l), lambda b, t: (b, 0, t))]
    args = [x_cat]
    if n_cont:
        in_specs.append(pl.BlockSpec((None, n_cont, tile_l), lambda b, t: (b, 0, t)))
        args.append(x_cont)
    for w in tables:
        # Constant index_map -> each small per-channel table is DMA'd into VMEM once
        # and reused for every grid point.
        in_specs.append(pl.BlockSpec(w.shape, lambda b, t: (0, 0)))
        args.append(w)

    table_bytes = sum(int(np.prod(w.shape)) * w.dtype.itemsize for w in tables)
    vmem_limit = _vmem_limit_bytes(K, n_cont, d_out, tile_l, n_cats, table_bytes,
                                   compute_dtype.itemsize)

    out = pl.pallas_call(
        kernel,
        out_shape=jax.ShapeDtypeStruct((B, d_out, l_pad), jnp.float32),
        grid=grid,
        in_specs=in_specs,
        out_specs=pl.BlockSpec((None, d_out, tile_l), lambda b, t: (b, 0, t)),
        compiler_params=pltpu.CompilerParams(
            dimension_semantics=("parallel", "parallel"),
            vmem_limit_bytes=vmem_limit),
    )(*args)

    if l_pad != L:
        out = out[:, :, :L]
    return out


# ------------------------- MultiEmbedding (JAX) -------------------------

class MultiEmbedding:
    def __init__(self, c_in, n_cat_embeds, cat_embed_dims=None, cat_pos=None,
                 std=0.01, cat_padding_idxs=None, table_dtype=jnp.float32, key=None):
        n_cat_embeds = list(n_cat_embeds) if isinstance(n_cat_embeds, (list, tuple)) \
            else [n_cat_embeds]
        if cat_padding_idxs is None:
            cat_padding_idxs = [None] * len(n_cat_embeds)
        else:
            cat_padding_idxs = list(cat_padding_idxs) if isinstance(cat_padding_idxs, (list, tuple)) \
                else [cat_padding_idxs]
            if len(cat_padding_idxs) == 1 and len(cat_padding_idxs) < len(n_cat_embeds):
                cat_padding_idxs = cat_padding_idxs * len(n_cat_embeds)
        if cat_embed_dims is None:
            cat_embed_dims = [emb_sz_rule(s) for s in n_cat_embeds]
        else:
            cat_embed_dims = list(cat_embed_dims) if isinstance(cat_embed_dims, (list, tuple)) \
                else [cat_embed_dims]
            if len(cat_embed_dims) == 1:
                cat_embed_dims = cat_embed_dims * len(n_cat_embeds)

        if cat_pos is not None:
            cat_pos = np.asarray(list(cat_pos))
        else:
            cat_pos = np.arange(len(n_cat_embeds))
        self.cat_pos = cat_pos
        self.cont_pos = np.array(
            [p for p in range(c_in) if p not in set(cat_pos.tolist())], dtype=np.int32)

        self.n_cats = [int(n) for n in n_cat_embeds]
        self.dims = [int(d) for d in cat_embed_dims]
        self.d_total = int(sum(self.dims))
        # Indices travel as floats (the torch module rounds a float input); exact < 2^24.
        assert max(self.n_cats) < (1 << 24), \
            "vocab too large for float-transported indices"

        # Deterministic truncated-normal init (trunc_normal_, std=std).
        if key is None:
            key = jax.random.PRNGKey(0)
        self.weights = []   # per-channel (n_i, d_i) f32 tables, kept for the reference
        for n, d, pad in zip(self.n_cats, self.dims, cat_padding_idxs):
            key, sub = jax.random.split(key)
            w = std * jax.random.truncated_normal(sub, -2.0, 2.0, (n, d), jnp.float32)
            if pad is not None:
                w = w.at[pad].set(0.0)
            self.weights.append(w)

        # Per-channel transposed tables (d_i, n_i): lane axis = categories, so the
        # in-kernel (d_i, n_i) @ (n_i, T) matmul keeps tokens on the lane axis.
        self.table_dtype = table_dtype
        self.tables = [w.T.astype(table_dtype) for w in self.weights]

    def __call__(self, x):
        if isinstance(x, tuple):
            x_cat, x_cont = x[0], x[1]
        else:
            x_cat = x[:, self.cat_pos]                                     # (B, K, L)
            x_cont = x[:, self.cont_pos] if self.cont_pos.size else None   # (B, n_cont, L)
        return multi_embedding_forward(
            x_cat, x_cont, self.tables, self.n_cats, self.dims)


# ------------------------- reference (pure JAX) -------------------------

def multi_embedding_ref(x, module: MultiEmbedding):
    x_cat = x[:, module.cat_pos]
    x_cont = x[:, module.cont_pos] if module.cont_pos.size else None
    embs = []
    for i, w in enumerate(module.weights):
        idx = jnp.round(x_cat[:, i]).astype(jnp.int32)     # (B, L)
        e = jnp.take(w, idx, axis=0)                       # (B, L, d)
        embs.append(jnp.transpose(e, (0, 2, 1)))           # (B, d, L)
    parts = embs + ([x_cont] if x_cont is not None else [])
    return jnp.concatenate(parts, axis=1)


# ------------------------- main -------------------------

if __name__ == "__main__":
    key = jax.random.PRNGKey(0)
    B, C, L = 2, 4, 16
    n_cat_embeds = [5, 8]          # two categorical channels (cat_pos = [0, 1])
    module = MultiEmbedding(C, n_cat_embeds, key=jax.random.PRNGKey(0))

    # Input: categorical channels hold integer-valued floats, the rest are continuous.
    k1, k2, k3 = jax.random.split(key, 3)
    cat0 = jax.random.randint(k1, (B, 1, L), 0, n_cat_embeds[0]).astype(jnp.float32)
    cat1 = jax.random.randint(k2, (B, 1, L), 0, n_cat_embeds[1]).astype(jnp.float32)
    cont = jax.random.normal(k3, (B, C - 2, L), jnp.float32)
    x = jnp.concatenate([cat0, cat1, cont], axis=1)        # (B, C, L)

    out = jax.block_until_ready(module(x))
    ref = multi_embedding_ref(x, module)
    expected_channels = sum(emb_sz_rule(n) for n in n_cat_embeds) + (C - 2)
    assert out.shape == (B, expected_channels, L), out.shape
    assert np.allclose(np.asarray(out), np.asarray(ref), atol=1e-5), "mismatch vs f32 reference"

    # Optional bf16-table path (perf flag): one-hot is exact in bf16, accumulation is
    # f32; only the table values round to bf16 -> compare with a looser tolerance.
    module_bf16 = MultiEmbedding(C, n_cat_embeds, table_dtype=jnp.bfloat16,
                                 key=jax.random.PRNGKey(0))
    out_bf16 = jax.block_until_ready(module_bf16(x))
    assert out_bf16.shape == (B, expected_channels, L)
    assert np.allclose(np.asarray(out_bf16), np.asarray(ref), atol=1e-3), "bf16 mismatch"

    print("KERNEL_OK")
</pallas_src>

<mosaic_0001>
module attributes {stable_mosaic.version = 11 : i64} {
  func.func @kernel(%arg0: i32, %arg1: i32, %arg2: memref<1x2x128xf32, #tpu.memory_space<vmem>>, %arg3: memref<1x2x128xf32, #tpu.memory_space<vmem>>, %arg4: memref<4x5xf32, #tpu.memory_space<vmem>>, %arg5: memref<5x8xf32, #tpu.memory_space<vmem>>, %arg6: memref<1x11x128xf32, #tpu.memory_space<vmem>>) attributes {dimension_semantics = [#tpu.dimension_semantics<parallel>, #tpu.dimension_semantics<parallel>], iteration_bounds = array<i64: 2, 1>, scalar_prefetch = 0 : i64, scratch_operands = 0 : i64, tpu.core_type = #tpu.core_type<tc>, window_params = [{transform_indices = @transform_0, window_bounds = array<i64: 1, 2, 128>}, {transform_indices = @transform_1, window_bounds = array<i64: 1, 2, 128>}, {pipeline_mode = #tpu.pipeline_mode<synchronous>, transform_indices = @transform_2, window_bounds = array<i64: 4, 5>}, {pipeline_mode = #tpu.pipeline_mode<synchronous>, transform_indices = @transform_3, window_bounds = array<i64: 5, 8>}, {transform_indices = @transform_4, window_bounds = array<i64: 1, 11, 128>}]} {
    %c0 = arith.constant 0 : index
    %c0_0 = arith.constant 0 : index
    %c0_1 = arith.constant 0 : index
    %0 = vector.load %arg2[%c0, %c0_0, %c0_1] : memref<1x2x128xf32, #tpu.memory_space<vmem>>, vector<1x1x128xf32>
    %1 = vector.shape_cast %0 : vector<1x1x128xf32> to vector<1x128xf32>
    %2 = math.roundeven %1 : vector<1x128xf32>
    %3 = arith.fptosi %2 : vector<1x128xf32> to vector<1x128xi32>
    %c0_i32 = arith.constant 0 : i32
    %c4_i32 = arith.constant 4 : i32
    %4 = vector.broadcast %c0_i32 : i32 to vector<1x128xi32>
    %5 = arith.maxsi %4, %3 : vector<1x128xi32>
    %6 = vector.broadcast %c4_i32 : i32 to vector<1x128xi32>
    %7 = arith.minsi %6, %5 : vector<1x128xi32>
    %8 = tpu.iota {dimensions = array<i32: 0>} : vector<5x128xi32>
    %9 = vector.broadcast %7 : vector<1x128xi32> to vector<5x128xi32>
    %10 = arith.cmpi eq, %8, %9 : vector<5x128xi32>
    %11 = arith.extui %10 : vector<5x128xi1> to vector<5x128xi32>
    %12 = arith.sitofp %11 : vector<5x128xi32> to vector<5x128xf32>
    %c0_2 = arith.constant 0 : index
    %c0_3 = arith.constant 0 : index
    %13 = vector.load %arg4[%c0_2, %c0_3] : memref<4x5xf32, #tpu.memory_space<vmem>>, vector<4x5xf32>
    %cst = arith.constant dense<0.000000e+00> : vector<4x128xf32>
    %14 = tpu.matmul %13, %12, %cst {dimension_numbers = #tpu.dot_dimension_numbers<[1], [0], [0], [1], [0, 0, 1, 1], [], []>} : vector<4x5xf32>, vector<5x128xf32>, vector<4x128xf32> -> vector<4x128xf32>
    %c0_4 = arith.constant 0 : index
    %c0_5 = arith.constant 0 : index
    %c0_6 = arith.constant 0 : index
    %15 = vector.load %arg6[%c0_4, %c0_5, %c0_6] : memref<1x11x128xf32, #tpu.memory_space<vmem>>, vector<1x4x128xf32>
    %16 = vector.shape_cast %15 : vector<1x4x128xf32> to vector<4x128xf32>
    %17 = vector.shape_cast %14 : vector<4x128xf32> to vector<1x4x128xf32>
    tpu.vector_store %arg6[%c0_4, %c0_5, %c0_6], %17 {strides = array<i32>} : memref<1x11x128xf32, #tpu.memory_space<vmem>>, vector<1x4x128xf32>,
    %c0_7 = arith.constant 0 : index
    %c1 = arith.constant 1 : index
    %c0_8 = arith.constant 0 : index
    %18 = vector.load %arg2[%c0_7, %c1, %c0_8] : memref<1x2x128xf32, #tpu.memory_space<vmem>>, vector<1x1x128xf32>
    %19 = vector.shape_cast %18 : vector<1x1x128xf32> to vector<1x128xf32>
    %20 = math.roundeven %19 : vector<1x128xf32>
    %21 = arith.fptosi %20 : vector<1x128xf32> to vector<1x128xi32>
    %c0_i32_9 = arith.constant 0 : i32
    %c7_i32 = arith.constant 7 : i32
    %22 = vector.broadcast %c0_i32_9 : i32 to vector<1x128xi32>
    %23 = arith.maxsi %22, %21 : vector<1x128xi32>
    %24 = vector.broadcast %c7_i32 : i32 to vector<1x128xi32>
    %25 = arith.minsi %24, %23 : vector<1x128xi32>
    %26 = tpu.iota {dimensions = array<i32: 0>} : vector<8x128xi32>
    %27 = vector.broadcast %25 : vector<1x128xi32> to vector<8x128xi32>
    %28 = arith.cmpi eq, %26, %27 : vector<8x128xi32>
    %29 = arith.extui %28 : vector<8x128xi1> to vector<8x128xi32>
    %30 = arith.sitofp %29 : vector<8x128xi32> to vector<8x128xf32>
    %c0_10 = arith.constant 0 : index
    %c0_11 = arith.constant 0 : index
    %31 = vector.load %arg5[%c0_10, %c0_11] : memref<5x8xf32, #tpu.memory_space<vmem>>, vector<5x8xf32>
    %cst_12 = arith.constant dense<0.000000e+00> : vector<5x128xf32>
    %32 = tpu.matmul %31, %30, %cst_12 {dimension_numbers = #tpu.dot_dimension_numbers<[1], [0], [0], [1], [0, 0, 1, 1], [], []>} : vector<5x8xf32>, vector<8x128xf32>, vector<5x128xf32> -> vector<5x128xf32>
    %c0_13 = arith.constant 0 : index
    %c4 = arith.constant 4 : index
    %c0_14 = arith.constant 0 : index
    %33 = vector.load %arg6[%c0_13, %c4, %c0_14] : memref<1x11x128xf32, #tpu.memory_space<vmem>>, vector<1x5x128xf32>
    %34 = vector.shape_cast %33 : vector<1x5x128xf32> to vector<5x128xf32>
    %35 = vector.shape_cast %32 : vector<5x128xf32> to vector<1x5x128xf32>
    tpu.vector_store %arg6[%c0_13, %c4, %c0_14], %35 {strides = array<i32>} : memref<1x11x128xf32, #tpu.memory_space<vmem>>, vector<1x5x128xf32>,
    %c0_15 = arith.constant 0 : index
    %c0_16 = arith.constant 0 : index
    %c0_17 = arith.constant 0 : index
    %36 = vector.load %arg3[%c0_15, %c0_16, %c0_17] : memref<1x2x128xf32, #tpu.memory_space<vmem>>, vector<1x2x128xf32>
    %37 = vector.shape_cast %36 : vector<1x2x128xf32> to vector<2x128xf32>
    %c0_18 = arith.constant 0 : index
    %c9 = arith.constant 9 : index
    %c0_19 = arith.constant 0 : index
    %38 = vector.load %arg6[%c0_18, %c9, %c0_19] : memref<1x11x128xf32, #tpu.memory_space<vmem>>, vector<1x2x128xf32>
    %39 = vector.shape_cast %38 : vector<1x2x128xf32> to vector<2x128xf32>
    %40 = vector.shape_cast %37 : vector<2x128xf32> to vector<1x2x128xf32>
    tpu.vector_store %arg6[%c0_18, %c9, %c0_19], %40 {strides = array<i32>} : memref<1x11x128xf32, #tpu.memory_space<vmem>>, vector<1x2x128xf32>,
    return
  }
  func.func @transform_0(%arg0: i32, %arg1: i32) -> (i32, i32, i32) {
    %c0_i32 = arith.constant 0 : i32
    %c0_i32_0 = arith.constant 0 : i32
    return %arg0, %c0_i32, %arg1 : i32, i32, i32
  }
  func.func @transform_1(%arg0: i32, %arg1: i32) -> (i32, i32, i32) {
    %c0_i32 = arith.constant 0 : i32
    %c0_i32_0 = arith.constant 0 : i32
    return %arg0, %c0_i32, %arg1 : i32, i32, i32
  }
  func.func @transform_2(%arg0: i32, %arg1: i32) -> (i32, i32) {
    %c0_i32 = arith.constant 0 : i32
    %c0_i32_0 = arith.constant 0 : i32
    %c0_i32_1 = arith.constant 0 : i32
    return %c0_i32, %c0_i32_0 : i32, i32
  }
  func.func @transform_3(%arg0: i32, %arg1: i32) -> (i32, i32) {
    %c0_i32 = arith.constant 0 : i32
    %c0_i32_0 = arith.constant 0 : i32
    %c0_i32_1 = arith.constant 0 : i32
    return %c0_i32, %c0_i32_0 : i32, i32
  }
  func.func @transform_4(%arg0: i32, %arg1: i32) -> (i32, i32, i32) {
    %c0_i32 = arith.constant 0 : i32
    %c0_i32_0 = arith.constant 0 : i32
    return %arg0, %c0_i32, %arg1 : i32, i32, i32
  }
}

</mosaic_0001>

<llo_original>
// kernel: tpu_custom_call.1
$region0: #{tpu_custom_call.1}
  #allocation0 [shape = 'u32[]', space=smem, size = 0x4, offset = 0x4, fixed_abs, tag = 'smem constant byte address 0x4 - core index']
  #allocation1 [shape = 'u32[144,128]{1,0:T(1,128)}', space=vmem, size = 0x12000, scoped, tag = 'internal scratch']
  %s0 = inlined_call_operand.hbm [shape: f32[2,2,128], index: 0, kind: input, shape index: {}]
  %s1 = inlined_call_operand.hbm [shape: f32[2,2,128], index: 1, kind: input, shape index: {}]
  %s2 = inlined_call_operand.hbm [shape: f32[4,5], index: 2, kind: input, shape index: {}]
  %s3 = inlined_call_operand.vmem [shape: f32[5,8], index: 3, kind: input, shape index: {}]
  %s4 = inlined_call_operand.vmem [shape: f32[2,11,128], index: 4, kind: output, shape index: {}]
  %s5 = sld [smem:[#allocation0]]
  $region61: #{tpu_custom_call.1} parent=0
    _
  %s7 = ssub.s32 1, %s5
  %s8 = scalar_select 0, %s7, %s5
  $region1: #{tpu_custom_call.1} parent=0
    #allocation2 [shape = 'u8[2048]{0}', space=vmem, size = 0x800, scoped, tag = 'input window, operand 0']
    #allocation3 [shape = 's32[2]{0}', space=sflag, size = 0x8, scoped, tag = 'scoped memory for tpu_custom_call.1']
    #allocation4 [shape = 'u8[2048]{0}', space=vmem, size = 0x800, scoped, tag = 'input window, operand 1']
    #allocation5 [shape = 's32[2]{0}', space=sflag, size = 0x8, scoped, tag = 'scoped memory for tpu_custom_call.1']
    #allocation6 [shape = 'u8[2048]{0}', space=vmem, size = 0x800, scoped, tag = 'input window, operand 2, single buffered']
    %9 = vsyncpa [#allocation3], 0
    %s10 = scalar_lea.sflag [#allocation3], 1
    %11 = vsyncpa %s10, 0
    %12 = vsyncpa [#allocation5], 0
    %s13 = scalar_lea.sflag [#allocation5], 1
    %14 = vsyncpa %s13, 0
    loop: start=0, step=1, limit=4
    $region2: #{tpu_custom_call.1} parent=1 // loop_pre_header
      _
    $region3: #{tpu_custom_call.1} parent=1 // loop_header
      %s16 = sphi 0, %s20
      %p17 = scmp.ge.s32.totalorder %s16, 4
      %s23 = sphi 0, %s35
      %s24 = sphi 0, %s31
      %s25 = sphi 0, %s23
      %s26 = sphi 0, %s24
      %s27 = sphi 0, %s25
      %s28 = sphi 0, %s26
      %s40 = sphi 0, %s42
      %s43 = sphi 0, %s40
      %s44 = sphi 0, %s43
      %s60 = sphi 0, %s44
      %s68 = sphi 0, %s70
      %s71 = sphi 0, %s68
      %s72 = sphi 0, %s71
      %s88 = sphi 0, %s72
      %s92 = sphi 0, %s92
      %s94 = sphi 0, %s92
      %s95 = sphi 0, %s94
      %s109 = sphi 0, %s95
      %s113 = sphi 0, %s113
      %s115 = sphi 0, %s113
      %s116 = sphi 0, %s115
      %s130 = sphi 0, %s116
      %s138 = sphi 0, %s140
      %s141 = sphi 0, %s138
      %s142 = sphi 0, %s141
      %s158 = sphi 0, %s142
    $region4: #{tpu_custom_call.1} parent=1 // loop_header_branch
      %19 = sbr.rel (%p17) target = $region8
    $region5: #{tpu_custom_call.1} parent=1 // loop_body
      %s21 = ssub.s32 %s16, 1
      %s22 = ssub.s32 %s16, 2
      %s29 = sadd.s32 1, %s24
      %p30 = scmp.ge.s32.totalorder %s29, 1
      %s31 = scalar_select %p30, 0, %s29
      %s32 = sadd.s32 1, %s23
      %s33 = scalar_select %p30, %s32, %s23
      %p34 = scmp.ge.s32.totalorder %s33, 2
      %s35 = scalar_select %p34, 0, %s33
      %s36 = ssub.s32 %s23, %s35
      %s37 = ssub.s32 %s24, %s31
      %s38 = sor.u32 %s36, %s37
      %p39 = scmp.eq.s32.totalorder %s38, 0
      %s41 = sadd.s32 %s40, 1
      %s42 = scalar_select %p39, %s40, %s41
      %p45 = pneg %p39
      %p46 = scmp.eq.s32.totalorder %s16, 1
      %p47 = por %p45, %p46
      %p48 = scmp.ne.s32.totalorder %s40, %s43
      %p49 = scmp.eq.s32.totalorder %s16, 0
      %p50 = por %p48, %p49
      %p51 = scmp.ne.s32.totalorder %s40, %s43
      %p52 = scmp.eq.s32.totalorder %s21, 1
      %p53 = por %p51, %p52
      %p54 = scmp.ne.s32.totalorder %s43, %s44
      %p55 = scmp.eq.s32.totalorder %s21, 0
      %p56 = por %p54, %p55
      %p57 = scmp.ne.s32.totalorder %s43, %s44
      %p58 = scmp.eq.s32.totalorder %s22, 1
      %p59 = por %p57, %p58
      %p61 = scmp.ne.s32.totalorder %s44, %s60
      %p62 = scmp.eq.s32.totalorder %s22, 0
      %p63 = por %p61, %p62
      %s64 = ssub.s32 %s23, %s35
      %s65 = ssub.s32 %s24, %s31
      %s66 = sor.u32 %s64, %s65
      %p67 = scmp.eq.s32.totalorder %s66, 0
      %s69 = sadd.s32 %s68, 1
      %s70 = scalar_select %p67, %s68, %s69
      %p73 = pneg %p67
      %p74 = scmp.eq.s32.totalorder %s16, 1
      %p75 = por %p73, %p74
      %p76 = scmp.ne.s32.totalorder %s68, %s71
      %p77 = scmp.eq.s32.totalorder %s16, 0
      %p78 = por %p76, %p77
      %p79 = scmp.ne.s32.totalorder %s68, %s71
      %p80 = scmp.eq.s32.totalorder %s21, 1
      %p81 = por %p79, %p80
      %p82 = scmp.ne.s32.totalorder %s71, %s72
      %p83 = scmp.eq.s32.totalorder %s21, 0
      %p84 = por %p82, %p83
      %p85 = scmp.ne.s32.totalorder %s71, %s72
      %p86 = scmp.eq.s32.totalorder %s22, 1
      %p87 = por %p85, %p86
      %p89 = scmp.ne.s32.totalorder %s72, %s88
      %p90 = scmp.eq.s32.totalorder %s22, 0
      %p91 = por %p89, %p90
      %s93 = sadd.s32 %s92, 1
      %p96 = scmp.eq.s32.totalorder %s16, 1
      %p97 = scmp.ne.s32.totalorder %s92, %s94
      %p98 = scmp.eq.s32.totalorder %s16, 0
      %p99 = por %p97, %p98
      %p100 = scmp.ne.s32.totalorder %s92, %s94
      %p101 = scmp.eq.s32.totalorder %s21, 1
      %p102 = por %p100, %p101
      %p103 = scmp.ne.s32.totalorder %s94, %s95
      %p104 = scmp.eq.s32.totalorder %s21, 0
      %p105 = por %p103, %p104
      %p106 = scmp.ne.s32.totalorder %s94, %s95
      %p107 = scmp.eq.s32.totalorder %s22, 1
      %p108 = por %p106, %p107
      %p110 = scmp.ne.s32.totalorder %s95, %s109
      %p111 = scmp.eq.s32.totalorder %s22, 0
      %p112 = por %p110, %p111
      %s114 = sadd.s32 %s113, 1
      %p117 = scmp.eq.s32.totalorder %s16, 1
      %p118 = scmp.ne.s32.totalorder %s113, %s115
      %p119 = scmp.eq.s32.totalorder %s16, 0
      %p120 = por %p118, %p119
      %p121 = scmp.ne.s32.totalorder %s113, %s115
      %p122 = scmp.eq.s32.totalorder %s21, 1
      %p123 = por %p121, %p122
      %p124 = scmp.ne.s32.totalorder %s115, %s116
      %p125 = scmp.eq.s32.totalorder %s21, 0
      %p126 = por %p124, %p125
      %p127 = scmp.ne.s32.totalorder %s115, %s116
      %p128 = scmp.eq.s32.totalorder %s22, 1
      %p129 = por %p127, %p128
      %p131 = scmp.ne.s32.totalorder %s116, %s130
      %p132 = scmp.eq.s32.totalorder %s22, 0
      %p133 = por %p131, %p132
      %s134 = ssub.s32 %s23, %s35
      %s135 = ssub.s32 %s24, %s31
      %s136 = sor.u32 %s134, %s135
      %p137 = scmp.eq.s32.totalorder %s136, 0
      %s139 = sadd.s32 %s138, 1
      %s140 = scalar_select %p137, %s138, %s139
      %p143 = pneg %p137
      %p144 = scmp.eq.s32.totalorder %s16, 1
      %p145 = por %p143, %p144
      %p146 = scmp.ne.s32.totalorder %s138, %s141
      %p147 = scmp.eq.s32.totalorder %s16, 0
      %p148 = por %p146, %p147
      %p149 = scmp.ne.s32.totalorder %s138, %s141
      %p150 = scmp.eq.s32.totalorder %s21, 1
      %p151 = por %p149, %p150
      %p152 = scmp.ne.s32.totalorder %s141, %s142
      %p153 = scmp.eq.s32.totalorder %s21, 0
      %p154 = por %p152, %p153
      %p155 = scmp.ne.s32.totalorder %s141, %s142
      %p156 = scmp.eq.s32.totalorder %s22, 1
      %p157 = por %p155, %p156
      %p159 = scmp.ne.s32.totalorder %s142, %s158
      %p160 = scmp.eq.s32.totalorder %s22, 0
      %p161 = por %p159, %p160
      %p162 = scmp.le.s32.totalorder 1, %s16
      %p163 = scmp.lt.s32.totalorder %s16, 3
      %p164 = pnand %p162, %p163
      %p165 = pneg %p164
      // Predicated region
      $region9: #{tpu_custom_call.1} parent=5 // pred_check
        _
      $region10: #{tpu_custom_call.1} parent=5 // pred_check_branch
        %167 = sbr.rel (%p164) target = $region12
      $region11: #{tpu_custom_call.1} parent=5 // pred_region
        %s168 = ssub.s32 %s16, 1
        // Predicated region
        $region13: #{tpu_custom_call.1} parent=11 // pred_check
          %p169 = pneg %p105
        $region14: #{tpu_custom_call.1} parent=11 // pred_check_branch
          %171 = sbr.rel (%p169) target = $region16
        $region15: #{tpu_custom_call.1} parent=11 // pred_region
          %s173 = ssub.s32 64, 64
          %174 = vsyncadd [#allocation5], %s173
          %s176 = sshll.u32 [#allocation6], 4
          %s177 = int_to_ptr.vmem [resolvable:$true] %s176
          %179 = dma.hbm_to_vmem [thread:$0]  %s2, 64, %s177, [#allocation5]
        $region16: #{tpu_custom_call.1} parent=11 // pred_fallthru
          _
        // Predicated region
        $region17: #{tpu_custom_call.1} parent=11 // pred_check
          %p180 = pneg %p126
        $region18: #{tpu_custom_call.1} parent=11 // pred_check_branch
          %182 = sbr.rel (%p180) target = $region20
        $region19: #{tpu_custom_call.1} parent=11 // pred_region
          _
        $region20: #{tpu_custom_call.1} parent=11 // pred_fallthru
          _
      $region12: #{tpu_custom_call.1} parent=5 // pred_fallthru
        _
      %p183 = scmp.lt.s32.totalorder %s16, 2
      // Predicated region
      $region21: #{tpu_custom_call.1} parent=5 // pred_check
        %p184 = pneg %p183
      $region22: #{tpu_custom_call.1} parent=5 // pred_check_branch
        %186 = sbr.rel (%p184) target = $region24
      $region23: #{tpu_custom_call.1} parent=5 // pred_region
        // Predicated region
        $region25: #{tpu_custom_call.1} parent=23 // pred_check
          %p187 = pneg %p50
        $region26: #{tpu_custom_call.1} parent=23 // pred_check_branch
          %189 = sbr.rel (%p187) target = $region28
        $region27: #{tpu_custom_call.1} parent=23 // pred_region
          %s190 = sand.u32 %s40, 1
          %s191 = scalar_lea.sflag [#allocation3], %s190
          %s192 = sand.u32 %s40, 1
          %s193 = smul.addr %s192, 2
          %s194 = scalar_lea.vmem [#allocation2], %s193
          %s196 = ssub.s32 32, 32
          %197 = vsyncadd %s191, %s196
          %s198 = sadd.s32 %s24, %s23
          %s199 = smul.addr %s198, 32
          %s200 = scalar_lea.hbm %s0, %s199
          %s202 = sshll.u32 %s194, 4
          %s203 = int_to_ptr.vmem [resolvable:$true] %s202
          %205 = dma.hbm_to_vmem [thread:$0]  %s200, 32, %s203, %s191
        $region28: #{tpu_custom_call.1} parent=23 // pred_fallthru
          _
        // Predicated region
        $region29: #{tpu_custom_call.1} parent=23 // pred_check
          %p206 = pneg %p78
        $region30: #{tpu_custom_call.1} parent=23 // pred_check_branch
          %208 = sbr.rel (%p206) target = $region32
        $region31: #{tpu_custom_call.1} parent=23 // pred_region
          %s209 = sand.u32 %s16, 1
          %s210 = scalar_lea.sflag [#allocation5], %s209
          %s211 = sand.u32 %s68, 1
          %s212 = smul.addr %s211, 2
          %s213 = scalar_lea.vmem [#allocation4], %s212
          %s215 = ssub.s32 32, 32
          %216 = vsyncadd %s210, %s215
          %s217 = sadd.s32 %s24, %s23
          %s218 = smul.addr %s217, 32
          %s219 = scalar_lea.hbm %s1, %s218
          %s221 = sshll.u32 %s213, 4
          %s222 = int_to_ptr.vmem [resolvable:$true] %s221
          %224 = dma.hbm_to_vmem [thread:$0]  %s219, 32, %s222, %s210
        $region32: #{tpu_custom_call.1} parent=23 // pred_fallthru
          _
      $region24: #{tpu_custom_call.1} parent=5 // pred_fallthru
        _
      %p225 = scmp.le.s32.totalorder 1, %s16
      %p226 = scmp.lt.s32.totalorder %s16, 3
      %p227 = pnand %p225, %p226
      %p228 = pneg %p227
      // Predicated region
      $region33: #{tpu_custom_call.1} parent=5 // pred_check
        _
      $region34: #{tpu_custom_call.1} parent=5 // pred_check_branch
        %230 = sbr.rel (%p227) target = $region36
      $region35: #{tpu_custom_call.1} parent=5 // pred_region
        %s231 = ssub.s32 %s16, 1
        %s232 = sand.u32 %s43, 1
        %s233 = scalar_lea.sflag [#allocation3], %s232
        %s234 = sand.u32 %s43, 1
        %s235 = smul.addr %s234, 2
        %s236 = scalar_lea.vmem [#allocation2], %s235
        // Predicated region
        $region37: #{tpu_custom_call.1} parent=35 // pred_check
          %p237 = pneg %p56
        $region38: #{tpu_custom_call.1} parent=35 // pred_check_branch
          %239 = sbr.rel (%p237) target = $region40
        $region39: #{tpu_custom_call.1} parent=35 // pred_region
          %240 = dma.done %s233, 32
        $region40: #{tpu_custom_call.1} parent=35 // pred_fallthru
          _
        %s241 = sand.u32 %s21, 1
        %s242 = scalar_lea.sflag [#allocation5], %s241
        %s243 = sand.u32 %s71, 1
        %s244 = smul.addr %s243, 2
        %s245 = scalar_lea.vmem [#allocation4], %s244
        // Predicated region
        $region41: #{tpu_custom_call.1} parent=35 // pred_check
          %p246 = pneg %p84
        $region42: #{tpu_custom_call.1} parent=35 // pred_check_branch
          %248 = sbr.rel (%p246) target = $region44
        $region43: #{tpu_custom_call.1} parent=35 // pred_region
          %249 = dma.done %s242, 32
        $region44: #{tpu_custom_call.1} parent=35 // pred_fallthru
          _
        // Predicated region
        $region45: #{tpu_custom_call.1} parent=35 // pred_check
          %p250 = pneg %p105
        $region46: #{tpu_custom_call.1} parent=35 // pred_check_branch
          %252 = sbr.rel (%p250) target = $region48
        $region47: #{tpu_custom_call.1} parent=35 // pred_region
          %253 = dma.done [#allocation5], 64
        $region48: #{tpu_custom_call.1} parent=35 // pred_fallthru
          _
        %s254 = sand.u32 %s43, 1
        %s255 = scalar_lea.sflag [#allocation3], %s254
        %s256 = sand.u32 %s43, 1
        %s257 = smul.addr %s256, 2
        %s258 = scalar_lea.vmem [#allocation2], %s257
        %p259 = pneg %p56
        %p260 = pneg %p53
        %s261 = sand.u32 %s21, 1
        %s262 = scalar_lea.sflag [#allocation5], %s261
        %s263 = sand.u32 %s71, 1
        %s264 = smul.addr %s263, 2
        %s265 = scalar_lea.vmem [#allocation4], %s264
        %p266 = pneg %p84
        %p267 = pneg %p81
        %p268 = pneg %p105
        %p269 = pneg %p102
        %p270 = pneg %p126
        %p271 = pneg %p123
        %p272 = pneg %p154
        %p273 = pneg %p151
        %p274 = scmp.lt.s32.totalorder %s25, 1
        %s275 = scalar_select %p274, %s25, 1
        %p276 = scmp.lt.s32.totalorder %s26, 0
        %s277 = scalar_select %p276, %s26, 0
        %s278 = smul.addr %s275, 2
        %s279 = sadd.s32 %s277, %s278
        %s280 = smul.addr %s279, 8
        %s281 = scalar_lea.vmem %s4, %s280
        %p282 = scmp.lt.s32.totalorder %s25, 1
        %s283 = scalar_select %p282, %s25, 1
        %p284 = scmp.lt.s32.totalorder %s26, 0
        %s285 = scalar_select %p284, %s26, 0
        %s286 = smul.addr %s283, 2
        %s287 = sadd.s32 %s285, %s286
        %s288 = smul.addr %s287, 8
        %s289 = scalar_lea.vmem %s4, %s288
        %v290 = vld [vmem:[%s236] sm:$0x1]
        %v291 = vcvt.f32.s32.ties.to.even %v290
        %vm292 = vcmp.gt.s32.totalorder %v291, 0
        %v293 = vsel %vm292, %v291, 0
        %vm294 = vcmp.lt.s32.totalorder %v293, 4
        %v295 = vsel %vm294, %v293, 4
        %v296 = vlaneseq
        %v297 = vshrl.u32 %v296, 7
        %v298 = vlaneseq
        %v299 = vshrl.u32 %v298, 7
        %v300 = vsub.s32 0, %v299
        %v301 = vrot.slane %v295, %v300
        %vm302 = vcmp.eq.s32.totalorder %v297, %v301
        %v303 = vsel %vm302, 1, 0
        %v304 = vcvt.s32.f32 %v303
        %v305 = vld [vmem:[#allocation6] sm:$0xf]
        %vm306 = vcmask 39936
        %v308 = vsel %vm306, %v305, 0
        %vm310 = vcmask 1044480
        %v312 = vsel %vm310, %v304, 0
        %314 = vmatprep.subr.mxu0 0.0
        %315 = vmatpush1.msra.mxu0 %v312
        %316 = vmatprep.subr.mxu0 0.0
        %317 = vmatpush1.msra.mxu0 0.0
        %318 = vmatprep.subr.mxu0 0.0
        %319 = vmatpush1.msra.mxu0 0.0
        %320 = vmatprep.subr.mxu0 0.0
        %321 = vmatpush1.msra.mxu0 0.0
        %322 = vmatprep.subr.mxu0 0.0
        %323 = vmatpush1.msra.mxu0 0.0
        %324 = vmatprep.subr.mxu0 0.0
        %325 = vmatpush1.msra.mxu0 0.0
        %326 = vmatprep.subr.mxu0 0.0
        %327 = vmatpush1.msra.mxu0 0.0
        %328 = vmatprep.subr.mxu0 0.0
        %329 = vmatpush1.msra.mxu0 0.0
        %330 = vmatprep.subr.mxu0 0.0
        %331 = vmatpush1.msra.mxu0 0.0
        %332 = vmatprep.subr.mxu0 0.0
        %333 = vmatpush1.msra.mxu0 0.0
        %334 = vmatprep.subr.mxu0 0.0
        %335 = vmatpush1.msra.mxu0 0.0
        %336 = vmatprep.subr.mxu0 0.0
        %337 = vmatpush1.msra.mxu0 0.0
        %338 = vmatprep.subr.mxu0 0.0
        %339 = vmatpush1.msra.mxu0 0.0
        %340 = vmatprep.subr.mxu0 0.0
        %341 = vmatpush1.msra.mxu0 0.0
        %342 = vmatprep.subr.mxu0 0.0
        %343 = vmatpush1.msra.mxu0 0.0
        %344 = vmatprep.subr.mxu0 0.0
        %345 = vmatpush1.msra.mxu0 0.0
        %346 = vmatprep.subr.mxu0 0.0
        %347 = vmatpush1.msra.mxu0 0.0
        %348 = vmatprep.subr.mxu0 0.0
        %349 = vmatpush1.msra.mxu0 0.0
        %350 = vmatprep.subr.mxu0 0.0
        %351 = vmatpush1.msra.mxu0 0.0
        %352 = vmatprep.subr.mxu0 0.0
        %353 = vmatpush1.msra.mxu0 0.0
        %354 = vmatprep.subr.mxu0 0.0
        %355 = vmatpush1.msra.mxu0 0.0
        %356 = vmatprep.subr.mxu0 0.0
        %357 = vmatpush1.msra.mxu0 0.0
        %358 = vmatprep.subr.mxu0 0.0
        %359 = vmatpush1.msra.mxu0 0.0
        %360 = vmatprep.subr.mxu0 0.0
        %361 = vmatpush1.msra.mxu0 0.0
        %362 = vmatprep.subr.mxu0 0.0
        %363 = vmatpush1.msra.mxu0 0.0
        %364 = vmatprep.subr.mxu0 0.0
        %365 = vmatpush1.msra.mxu0 0.0
        %366 = vmatprep.subr.mxu0 0.0
        %367 = vmatpush1.msra.mxu0 0.0
        %368 = vmatprep.subr.mxu0 0.0
        %369 = vmatpush1.msra.mxu0 0.0
        %370 = vmatprep.subr.mxu0 0.0
        %371 = vmatpush1.msra.mxu0 0.0
        %372 = vmatprep.subr.mxu0 0.0
        %373 = vmatpush1.msra.mxu0 0.0
        %374 = vmatprep.subr.mxu0 0.0
        %375 = vmatpush1.msra.mxu0 0.0
        %376 = vmatprep.subr.mxu0 0.0
        %377 = vmatpush1.msra.mxu0 0.0
        %378 = vmatprep.mubr.f32.mxu0 0.0
        %379 = vmatmul.mubr.f32.gmra.mrb[0].mxu0 %v308
        %v380 = vpop.f32.mrb[0].mxu0
        %v381 = vadd.f32 0.0, %v380
        %v382 = vpop.f32.mrb[0].mxu0
        %383 = vdwg.mxu0
        %384 = vst [vmem:[%s289] sm:$0xf] %v381
        %v385 = vld [vmem:[%s236 + $0x1] sm:$0x1]
        %v386 = vcvt.f32.s32.ties.to.even %v385
        %vm387 = vcmp.gt.s32.totalorder %v386, 0
        %v388 = vsel %vm387, %v386, 0
        %vm389 = vcmp.lt.s32.totalorder %v388, 7
        %v390 = vsel %vm389, %v388, 7
        %v391 = vlaneseq
        %v392 = vshrl.u32 %v391, 7
        %v393 = vsub.s32 0, %v392
        %v394 = vrot.slane %v390, %v393
        %vm395 = vcmp.eq.s32.totalorder %v297, %v394
        %v396 = vsel %vm395, 1, 0
        %v397 = vcvt.s32.f32 %v396
        %v398 = vld [vmem:[%s3] sm:$0x1f]
        %vm399 = vcmask 64512
        %v401 = vsel %vm399, %v398, 0
        %403 = vmatprep.subr.mxu0 0.0
        %404 = vmatpush1.msra.mxu0 %v397
        %405 = vmatprep.subr.mxu0 0.0
        %406 = vmatpush1.msra.mxu0 0.0
        %407 = vmatprep.subr.mxu0 0.0
        %408 = vmatpush1.msra.mxu0 0.0
        %409 = vmatprep.subr.mxu0 0.0
        %410 = vmatpush1.msra.mxu0 0.0
        %411 = vmatprep.subr.mxu0 0.0
        %412 = vmatpush1.msra.mxu0 0.0
        %413 = vmatprep.subr.mxu0 0.0
        %414 = vmatpush1.msra.mxu0 0.0
        %415 = vmatprep.subr.mxu0 0.0
        %416 = vmatpush1.msra.mxu0 0.0
        %417 = vmatprep.subr.mxu0 0.0
        %418 = vmatpush1.msra.mxu0 0.0
        %419 = vmatprep.subr.mxu0 0.0
        %420 = vmatpush1.msra.mxu0 0.0
        %421 = vmatprep.subr.mxu0 0.0
        %422 = vmatpush1.msra.mxu0 0.0
        %423 = vmatprep.subr.mxu0 0.0
        %424 = vmatpush1.msra.mxu0 0.0
        %425 = vmatprep.subr.mxu0 0.0
        %426 = vmatpush1.msra.mxu0 0.0
        %427 = vmatprep.subr.mxu0 0.0
        %428 = vmatpush1.msra.mxu0 0.0
        %429 = vmatprep.subr.mxu0 0.0
        %430 = vmatpush1.msra.mxu0 0.0
        %431 = vmatprep.subr.mxu0 0.0
        %432 = vmatpush1.msra.mxu0 0.0
        %433 = vmatprep.subr.mxu0 0.0
        %434 = vmatpush1.msra.mxu0 0.0
        %435 = vmatprep.subr.mxu0 0.0
        %436 = vmatpush1.msra.mxu0 0.0
        %437 = vmatprep.subr.mxu0 0.0
        %438 = vmatpush1.msra.mxu0 0.0
        %439 = vmatprep.subr.mxu0 0.0
        %440 = vmatpush1.msra.mxu0 0.0
        %441 = vmatprep.subr.mxu0 0.0
        %442 = vmatpush1.msra.mxu0 0.0
        %443 = vmatprep.subr.mxu0 0.0
        %444 = vmatpush1.msra.mxu0 0.0
        %445 = vmatprep.subr.mxu0 0.0
        %446 = vmatpush1.msra.mxu0 0.0
        %447 = vmatprep.subr.mxu0 0.0
        %448 = vmatpush1.msra.mxu0 0.0
        %449 = vmatprep.subr.mxu0 0.0
        %450 = vmatpush1.msra.mxu0 0.0
        %451 = vmatprep.subr.mxu0 0.0
        %452 = vmatpush1.msra.mxu0 0.0
        %453 = vmatprep.subr.mxu0 0.0
        %454 = vmatpush1.msra.mxu0 0.0
        %455 = vmatprep.subr.mxu0 0.0
        %456 = vmatpush1.msra.mxu0 0.0
        %457 = vmatprep.subr.mxu0 0.0
        %458 = vmatpush1.msra.mxu0 0.0
        %459 = vmatprep.subr.mxu0 0.0
        %460 = vmatpush1.msra.mxu0 0.0
        %461 = vmatprep.subr.mxu0 0.0
        %462 = vmatpush1.msra.mxu0 0.0
        %463 = vmatprep.subr.mxu0 0.0
        %464 = vmatpush1.msra.mxu0 0.0
        %465 = vmatprep.subr.mxu0 0.0
        %466 = vmatpush1.msra.mxu0 0.0
        %467 = vmatprep.mubr.f32.mxu0 0.0
        %468 = vmatmul.mubr.f32.gmra.mrb[0].mxu0 %v401
        %v469 = vpop.f32.mrb[0].mxu0
        %v470 = vadd.f32 0.0, %v469
        %v471 = vpop.f32.mrb[0].mxu0
        %472 = vdwg.mxu0
        %473 = vst [vmem:[%s289 + $0x4] sm:$0x1f] %v470
        %v474 = vld [vmem:[%s245] sm:$0x3]
        %475 = vst [vmem:[%s289 + $0x9] sm:$0x3] %v474
        %p476 = scmp.lt.s32.totalorder %s25, 1
        %s477 = scalar_select %p476, %s25, 1
        %p478 = scmp.lt.s32.totalorder %s26, 0
        %s479 = scalar_select %p478, %s26, 0
        %s480 = smul.addr %s477, 2
        %s481 = sadd.s32 %s479, %s480
        %s482 = smul.addr %s481, 8
        %s483 = scalar_lea.vmem %s4, %s482
        // Predicated region
        $region49: #{tpu_custom_call.1} parent=35 // pred_check
          %p484 = pneg %p151
        $region50: #{tpu_custom_call.1} parent=35 // pred_check_branch
          %486 = sbr.rel (%p484) target = $region52
        $region51: #{tpu_custom_call.1} parent=35 // pred_region
          _
        $region52: #{tpu_custom_call.1} parent=35 // pred_fallthru
          _
      $region36: #{tpu_custom_call.1} parent=5 // pred_fallthru
        _
      %p487 = scmp.le.s32.totalorder 2, %s16
      // Predicated region
      $region53: #{tpu_custom_call.1} parent=5 // pred_check
        %p488 = pneg %p487
      $region54: #{tpu_custom_call.1} parent=5 // pred_check_branch
        %490 = sbr.rel (%p488) target = $region56
      $region55: #{tpu_custom_call.1} parent=5 // pred_region
        %s491 = ssub.s32 %s16, 2
        // Predicated region
        $region57: #{tpu_custom_call.1} parent=55 // pred_check
          %p492 = pneg %p157
        $region58: #{tpu_custom_call.1} parent=55 // pred_check_branch
          %494 = sbr.rel (%p492) target = $region60
        $region59: #{tpu_custom_call.1} parent=55 // pred_region
          %p495 = scmp.lt.s32.totalorder %s27, 1
          %s496 = scalar_select %p495, %s27, 1
          %p497 = scmp.lt.s32.totalorder %s28, 0
          %s498 = scalar_select %p497, %s28, 0
          %s499 = smul.addr %s496, 2
          %s500 = sadd.s32 %s498, %s499
          %s501 = smul.addr %s500, 8
          %s502 = scalar_lea.vmem %s4, %s501
        $region60: #{tpu_custom_call.1} parent=55 // pred_fallthru
          _
      $region56: #{tpu_custom_call.1} parent=5 // pred_fallthru
        _
    $region6: #{tpu_custom_call.1} parent=1 // loop_footer
      %s20 = sadd.s32 1, %s16
    $region7: #{tpu_custom_call.1} parent=1 // loop_footer_branch
      %15 = sbr.rel target = $region3
    $region8: #{tpu_custom_call.1} parent=1 // loop_exit
      _
    %503 = vsyncpa [#allocation3], 1
    %s504 = scalar_lea.sflag [#allocation3], 1
    %505 = vsyncpa %s504, 1
    %506 = vsyncpa [#allocation5], 1
    %s507 = scalar_lea.sflag [#allocation5], 1
    %508 = vsyncpa %s507, 1

</llo_original>
